<compile_context>
chip_gen: v5e
topology: v5e:2x2
jax: 0.10.0
libtpu: 0.0.40
codegen_flags: <defaults>
</compile_context>

<pallas_src>
import functools

import jax
import jax.numpy as jnp
from jax.experimental import pallas as pl
from jax.experimental.pallas import tpu as pltpu

_LANES = 128
_SUBLANES_U8 = 32                       # uint8/int8 sublane packing: one vreg = (32, 128)
_LANE_DENSE_CAP = 4096                  # max lane-dense width (multiple of 128)
_VMEM_BUDGET_BYTES = 20 * 1024 * 1024   # double-buffered in+out pipeline footprint target
_VMEM_LIMIT_BYTES = 40 * 1024 * 1024    # < 64 MiB physical VMEM on v7x; safe on v5e/v6e too


def _normalize_kernel(x_ref, o_ref):
    # elementwise: float32(x) * (1/255)  (== x / 255.0 to within 1 ulp)
    o_ref[...] = x_ref[...].astype(jnp.float32) * jnp.float32(1.0 / 255.0)


def _round_up(x, m):
    return ((x + m - 1) // m) * m


def _round_down(x, m):
    return (x // m) * m


def _lane_dense_shape(total, fallback):
    """(rows, width) view of a flat array, with width a large multiple of 128.

    Falls back to `fallback` (rows = N*C*H, width = W) when the total element
    count has no multiple-of-128 factor (full-dim blocks remain legal there).
    """
    if total % _LANES == 0:
        q = total // _LANES
        max_d = min(q, _LANE_DENSE_CAP // _LANES)
        for d in range(max_d, 0, -1):
            if q % d == 0:
                width = d * _LANES
                return total // width, width
    return fallback


def _choose_tile_rows(rows, width, in_itemsize):
    """Largest row tile (multiple of 32) whose double-buffered in+out VMEM
    footprint fits the budget, preferring a tile that divides `rows` exactly."""
    width_pad = _round_up(width, _LANES)
    bytes_per_row = width_pad * (in_itemsize + 4) * 2      # in + f32 out, double-buffered
    max_tr = _VMEM_BUDGET_BYTES // bytes_per_row
    max_tr = max(_SUBLANES_U8, _round_down(max_tr, _SUBLANES_U8))
    if max_tr >= rows:
        # Whole array in one grid step: full-dim block (always legal); no forced
        # split — on single-TC v5e/v6e an extra step is pure ~0.35 us overhead.
        # TODO(synk): on v7x (2 TCs) a balanced 2-way split + CORE_PARALLEL may win.
        return rows
    # Prefer a tile that divides rows exactly (no masked edge block), multiples
    # of 32 first (uint8 sublane packing), then multiples of 8.  Don't shrink
    # the tile below max_tr/2 just to avoid a ragged edge.
    for step in (_SUBLANES_U8, 8):
        tr = _round_down(max_tr, step)
        lo = max(step, max_tr // 2)
        while tr >= lo:
            if rows % tr == 0:
                return tr
            tr -= step
    return max_tr


def _normalize_2d(x2, allow_fusion):
    """Cast + scale a (rows, width) array to float32 / 255 on the TPU."""
    rows, width = x2.shape
    tr = _choose_tile_rows(rows, width, x2.dtype.itemsize)
    grid = (pl.cdiv(rows, tr),)
    return pl.pallas_call(
        _normalize_kernel,
        out_shape=jax.ShapeDtypeStruct((rows, width), jnp.float32),
        grid=grid,
        in_specs=[pl.BlockSpec((tr, width), lambda i: (i, 0))],
        out_specs=pl.BlockSpec((tr, width), lambda i: (i, 0)),
        compiler_params=pltpu.CompilerParams(
            dimension_semantics=("parallel",),
            vmem_limit_bytes=_VMEM_LIMIT_BYTES,
            allow_input_fusion=[True] if allow_fusion else None,
        ),
    )(x2)


@functools.partial(jax.jit, static_argnames="allow_fusion")
def _forward_impl(img, *, allow_fusion=False):
    # Layout plumbing (transpose on the narrow input data) + lane-dense pad-free
    # 2-D view, all fused under one jit; with allow_fusion the transpose is
    # additionally fused into the Pallas input DMA (no standalone HBM pass).
    if img.ndim == 3:
        img = jnp.transpose(img, (2, 0, 1))[None]            # HWC  -> 1CHW
    else:
        img = jnp.transpose(img, (0, 3, 1, 2))                # NHWC -> NCHW
    n, c, h, w = img.shape
    total = n * c * h * w
    rows, width = _lane_dense_shape(total, (n * c * h, w))
    out = _normalize_2d(img.reshape(rows, width), allow_fusion)
    return out.reshape(n, c, h, w)


_FUSION_OK = None   # None = untested, True/False after the first call


def processor_forward(img):
    """JAX/Pallas equivalent of Processor.forward.

    img: HWC (3-D) or NHWC (4-D) array (typically uint8 pixel values).
    returns: NCHW float32 array with values in [0, 1].
    """
    global _FUSION_OK
    img = jnp.asarray(img)
    if img.ndim not in (3, 4):
        raise ValueError("The dim of inputs must be 3 or 4")
    # TODO(synk): np.ascontiguousarray has no meaning for JAX arrays; omitted.
    if _FUSION_OK is None:
        # One-time probe: try fusing the transpose into the Pallas input DMA and
        # verify against the unfused path; fall back if rejected or mismatched.
        try:
            fused = _forward_impl(img, allow_fusion=True)
            plain = _forward_impl(img, allow_fusion=False)
            jax.block_until_ready((fused, plain))
            _FUSION_OK = bool(jnp.array_equal(fused, plain))
            return fused if _FUSION_OK else plain
        except Exception:
            _FUSION_OK = False
            return _forward_impl(img, allow_fusion=False)
    return _forward_impl(img, allow_fusion=_FUSION_OK)


if __name__ == "__main__":
    key = jax.random.PRNGKey(0)

    # 4-D case: NHWC uint8 image batch (lane-dense view: 2*3*16*16 = 12*128)
    img4 = jax.random.randint(key, (2, 16, 16, 3), 0, 256, dtype=jnp.int32).astype(jnp.uint8)
    got4 = processor_forward(img4)
    jax.block_until_ready(got4)
    ref4 = jnp.transpose(img4.astype(jnp.float32) / 255.0, (0, 3, 1, 2))
    assert got4.shape == (2, 3, 16, 16) and got4.dtype == jnp.float32
    assert jnp.allclose(got4, ref4, atol=1e-6)

    # 3-D case: single HWC image
    img3 = img4[0]
    got3 = processor_forward(img3)
    jax.block_until_ready(got3)
    ref3 = jnp.transpose(img3.astype(jnp.float32) / 255.0, (2, 0, 1))[None]
    assert got3.shape == (1, 3, 16, 16) and got3.dtype == jnp.float32
    assert jnp.allclose(got3, ref3, atol=1e-6)

    # Odd shape: exercises the non-lane-dense fallback (total not % 128)
    key2 = jax.random.PRNGKey(1)
    img_odd = jax.random.randint(key2, (2, 5, 7, 3), 0, 256, dtype=jnp.int32).astype(jnp.uint8)
    got_odd = processor_forward(img_odd)
    jax.block_until_ready(got_odd)
    ref_odd = jnp.transpose(img_odd.astype(jnp.float32) / 255.0, (0, 3, 1, 2))
    assert got_odd.shape == (2, 3, 5, 7) and got_odd.dtype == jnp.float32
    assert jnp.allclose(got_odd, ref_odd, atol=1e-6)

    print("KERNEL_OK")
</pallas_src>

<mosaic_0001>
module attributes {stable_mosaic.version = 11 : i64} {
  func.func @_normalize_kernel(%arg0: i32, %arg1: memref<1x1536xi8, #tpu.memory_space<vmem>>, %arg2: memref<1x1536xf32, #tpu.memory_space<vmem>>) attributes {dimension_semantics = [#tpu.dimension_semantics<parallel>], iteration_bounds = array<i64: 1>, scalar_prefetch = 0 : i64, scratch_operands = 0 : i64, tpu.core_type = #tpu.core_type<tc>, window_params = [{transform_indices = @transform_0, window_bounds = array<i64: 1, 1536>}, {transform_indices = @transform_1, window_bounds = array<i64: 1, 1536>}]} {
    %c0 = arith.constant 0 : index
    %c0_0 = arith.constant 0 : index
    %0 = vector.load %arg1[%c0, %c0_0] : memref<1x1536xi8, #tpu.memory_space<vmem>>, vector<1x1536xi8>
    %1 = arith.uitofp %0 : vector<1x1536xi8> to vector<1x1536xf32>
    %cst = arith.constant 0.00392156886 : f32
    %2 = vector.broadcast %cst : f32 to vector<1x1536xf32>
    %3 = arith.mulf %1, %2 : vector<1x1536xf32>
    %c0_1 = arith.constant 0 : index
    %c0_2 = arith.constant 0 : index
    %4 = vector.load %arg2[%c0_1, %c0_2] : memref<1x1536xf32, #tpu.memory_space<vmem>>, vector<1x1536xf32>
    tpu.vector_store %arg2[%c0_1, %c0_2], %3 {strides = array<i32>} : memref<1x1536xf32, #tpu.memory_space<vmem>>, vector<1x1536xf32>,
    return
  }
  func.func @transform_0(%arg0: i32) -> (i32, i32) {
    %c0_i32 = arith.constant 0 : i32
    %c0_i32_0 = arith.constant 0 : i32
    return %arg0, %c0_i32 : i32, i32
  }
  func.func @transform_1(%arg0: i32) -> (i32, i32) {
    %c0_i32 = arith.constant 0 : i32
    %c0_i32_0 = arith.constant 0 : i32
    return %arg0, %c0_i32 : i32, i32
  }
}

module attributes {stable_mosaic.version = 11 : i64} {
  func.func @_normalize_kernel(%arg0: i32, %arg1: memref<1x1536xi8, #tpu.memory_space<vmem>>, %arg2: memref<1x1536xf32, #tpu.memory_space<vmem>>) attributes {dimension_semantics = [#tpu.dimension_semantics<parallel>], iteration_bounds = array<i64: 1>, scalar_prefetch = 0 : i64, scratch_operands = 0 : i64, tpu.core_type = #tpu.core_type<tc>, window_params = [{transform_indices = @transform_0, window_bounds = array<i64: 1, 1536>}, {transform_indices = @transform_1, window_bounds = array<i64: 1, 1536>}]} {
    %c0 = arith.constant 0 : index
    %c0_0 = arith.constant 0 : index
    %0 = vector.load %arg1[%c0, %c0_0] : memref<1x1536xi8, #tpu.memory_space<vmem>>, vector<1x1536xi8>
    %1 = arith.uitofp %0 : vector<1x1536xi8> to vector<1x1536xf32>
    %cst = arith.constant 0.00392156886 : f32
    %2 = vector.broadcast %cst : f32 to vector<1x1536xf32>
    %3 = arith.mulf %1, %2 : vector<1x1536xf32>
    %c0_1 = arith.constant 0 : index
    %c0_2 = arith.constant 0 : index
    %4 = vector.load %arg2[%c0_1, %c0_2] : memref<1x1536xf32, #tpu.memory_space<vmem>>, vector<1x1536xf32>
    tpu.vector_store %arg2[%c0_1, %c0_2], %3 {strides = array<i32>} : memref<1x1536xf32, #tpu.memory_space<vmem>>, vector<1x1536xf32>,
    return
  }
  func.func @transform_0(%arg0: i32) -> (i32, i32) {
    %c0_i32 = arith.constant 0 : i32
    %c0_i32_0 = arith.constant 0 : i32
    return %arg0, %c0_i32 : i32, i32
  }
  func.func @transform_1(%arg0: i32) -> (i32, i32) {
    %c0_i32 = arith.constant 0 : i32
    %c0_i32_0 = arith.constant 0 : i32
    return %arg0, %c0_i32 : i32, i32
  }
}

</mosaic_0001>

<llo_original>
// kernel: _forward_impl.1
$region0: #{_forward_impl.1}
  #allocation0 [shape = 'u32[]', space=smem, size = 0x4, offset = 0x4, fixed_abs, tag = 'smem constant byte address 0x4 - core index']
  #allocation1 [shape = 'u32[72,128]{1,0:T(1,128)}', space=vmem, size = 0x9000, scoped, tag = 'internal scratch']
  %s0 = inlined_call_operand.vmem [shape: u8[1,1536], index: 0, kind: input, shape index: {}]
  %s1 = inlined_call_operand.vmem [shape: f32[1,1536], index: 1, kind: output, shape index: {}]
  %s2 = sld [smem:[#allocation0]]
  $region14: #{_forward_impl.1} parent=0
    _
  %s4 = ssub.s32 1, %s2
  %s5 = scalar_select 0, %s4, %s2
  // Predicated region
  $region2: #{_forward_impl.1} parent=0 // pred_check
    _
  $region3: #{_forward_impl.1} parent=0 // pred_check_branch
    %7 = sbr.rel (0) target = $region5
  $region4: #{_forward_impl.1} parent=0 // pred_region
    _
  $region5: #{_forward_impl.1} parent=0 // pred_fallthru
    _
  %v8 = vld [vmem:[%s0] sm:$0xff]
  %v9 = vld [vmem:[%s0 + $0x8] sm:$0xf]
  %v10 = vunpack.c.0.s8 %v8
  %v11 = vunpack.c.1.s8 %v8
  %v12 = vunpack.c.2.s8 %v8
  %v13 = vunpack.c.3.s8 %v8
  %v14 = vunpack.c.0.s8 %v9
  %v15 = vunpack.c.1.s8 %v9
  %v16 = vand.u32 %v10, 255
  %v17 = vand.u32 %v11, 255
  %v18 = vand.u32 %v12, 255
  %v19 = vand.u32 %v13, 255
  %v20 = vand.u32 %v14, 255
  %v21 = vand.u32 %v15, 255
  %v22 = vcvt.s32.f32 %v16
  %v23 = vcvt.s32.f32 %v17
  %v24 = vcvt.s32.f32 %v18
  %v25 = vcvt.s32.f32 %v19
  %v26 = vcvt.s32.f32 %v20
  %v27 = vcvt.s32.f32 %v21
  %v28 = vmul.f32 %v22, 0.003921569
  %v29 = vmul.f32 %v23, 0.003921569
  %v30 = vmul.f32 %v24, 0.003921569
  %v31 = vmul.f32 %v25, 0.003921569
  %v32 = vmul.f32 %v26, 0.003921569
  %v33 = vmul.f32 %v27, 0.003921569
  %v40 = vrot.slane %v28, 3
  %v41 = vrot.slane %v29, 6
  %v42 = vrot.slane %v29, 1
  %v43 = vrot.slane %v30, 4
  %v44 = vrot.slane %v30, 7
  %v45 = vrot.slane %v31, 2
  %v46 = vrot.slane %v31, 5
  %v47 = vrot.slane %v32, 3
  %v48 = vrot.slane %v33, 6
  %v49 = vrot.slane %v33, 1
  %vm50 = vcmask 1040384
  %v51 = vsel %vm50, %v28, %v40
  %vm52 = vcmask 1042434
  %v53 = vsel %vm52, %v41, %v42
  %vm54 = vcmask 1041408
  %v55 = vsel %vm54, %v51, %v53
  %vm56 = vcmask 1044484
  %v57 = vsel %vm56, %v43, %v44
  %vm58 = vcmask 1046534
  %v59 = vsel %vm58, %v45, %v46
  %vm60 = vcmask 1045508
  %v61 = vsel %vm60, %v57, %v59
  %vm62 = vcmask 1043456
  %v63 = vsel %vm62, %v55, %v61
  %v64 = vsel %vm50, %v32, %v47
  %v65 = vsel %vm52, %v48, %v49
  %v66 = vsel %vm54, %v64, %v65
  %69 = vst [vmem:[%s1] sm:$0xff] %v63
  %v70 = vlaneseq
  %vm71 = vcmp.ge.s32.totalorder %v70, 0
  %vm72 = vcmp.lt.s32.totalorder %v70, 512
  %vm73 = vmand %vm71, %vm72
  %74 = vst.msk [vmem:[%s1 + $0x8] sm:$0xf] %vm73, %v66
  // Predicated region
  $region6: #{_forward_impl.1} parent=0 // pred_check
    _
  $region7: #{_forward_impl.1} parent=0 // pred_check_branch
    %76 = sbr.rel (0) target = $region9
  $region8: #{_forward_impl.1} parent=0 // pred_region
    _
  $region9: #{_forward_impl.1} parent=0 // pred_fallthru
    _
  // Predicated region
  $region10: #{_forward_impl.1} parent=0 // pred_check
    _
  $region11: #{_forward_impl.1} parent=0 // pred_check_branch
    %78 = sbr.rel (0) target = $region13
  $region12: #{_forward_impl.1} parent=0 // pred_region
    _
  $region13: #{_forward_impl.1} parent=0 // pred_fallthru
    _

// kernel: _forward_impl.1
$region0: #{_forward_impl.1}
  #allocation0 [shape = 'u32[]', space=smem, size = 0x4, offset = 0x4, fixed_abs, tag = 'smem constant byte address 0x4 - core index']
  #allocation1 [shape = 'u32[72,128]{1,0:T(1,128)}', space=vmem, size = 0x9000, scoped, tag = 'internal scratch']
  %s0 = inlined_call_operand.vmem [shape: u8[1,1536], index: 0, kind: input, shape index: {}]
  %s1 = inlined_call_operand.vmem [shape: f32[1,1536], index: 1, kind: output, shape index: {}]
  %s2 = sld [smem:[#allocation0]]
  $region14: #{_forward_impl.1} parent=0
    _
  %s4 = ssub.s32 1, %s2
  %s5 = scalar_select 0, %s4, %s2
  // Predicated region
  $region2: #{_forward_impl.1} parent=0 // pred_check
    _
  $region3: #{_forward_impl.1} parent=0 // pred_check_branch
    %7 = sbr.rel (0) target = $region5
  $region4: #{_forward_impl.1} parent=0 // pred_region
    _
  $region5: #{_forward_impl.1} parent=0 // pred_fallthru
    _
  %v8 = vld [vmem:[%s0] sm:$0xff]
  %v9 = vld [vmem:[%s0 + $0x8] sm:$0xf]
  %v10 = vunpack.c.0.s8 %v8
  %v11 = vunpack.c.1.s8 %v8
  %v12 = vunpack.c.2.s8 %v8
  %v13 = vunpack.c.3.s8 %v8
  %v14 = vunpack.c.0.s8 %v9
  %v15 = vunpack.c.1.s8 %v9
  %v16 = vand.u32 %v10, 255
  %v17 = vand.u32 %v11, 255
  %v18 = vand.u32 %v12, 255
  %v19 = vand.u32 %v13, 255
  %v20 = vand.u32 %v14, 255
  %v21 = vand.u32 %v15, 255
  %v22 = vcvt.s32.f32 %v16
  %v23 = vcvt.s32.f32 %v17
  %v24 = vcvt.s32.f32 %v18
  %v25 = vcvt.s32.f32 %v19
  %v26 = vcvt.s32.f32 %v20
  %v27 = vcvt.s32.f32 %v21
  %v28 = vmul.f32 %v22, 0.003921569
  %v29 = vmul.f32 %v23, 0.003921569
  %v30 = vmul.f32 %v24, 0.003921569
  %v31 = vmul.f32 %v25, 0.003921569
  %v32 = vmul.f32 %v26, 0.003921569
  %v33 = vmul.f32 %v27, 0.003921569
  %v40 = vrot.slane %v28, 3
  %v41 = vrot.slane %v29, 6
  %v42 = vrot.slane %v29, 1
  %v43 = vrot.slane %v30, 4
  %v44 = vrot.slane %v30, 7
  %v45 = vrot.slane %v31, 2
  %v46 = vrot.slane %v31, 5
  %v47 = vrot.slane %v32, 3
  %v48 = vrot.slane %v33, 6
  %v49 = vrot.slane %v33, 1
  %vm50 = vcmask 1040384
  %v51 = vsel %vm50, %v28, %v40
  %vm52 = vcmask 1042434
  %v53 = vsel %vm52, %v41, %v42
  %vm54 = vcmask 1041408
  %v55 = vsel %vm54, %v51, %v53
  %vm56 = vcmask 1044484
  %v57 = vsel %vm56, %v43, %v44
  %vm58 = vcmask 1046534
  %v59 = vsel %vm58, %v45, %v46
  %vm60 = vcmask 1045508
  %v61 = vsel %vm60, %v57, %v59
  %vm62 = vcmask 1043456
  %v63 = vsel %vm62, %v55, %v61
  %v64 = vsel %vm50, %v32, %v47
  %v65 = vsel %vm52, %v48, %v49
  %v66 = vsel %vm54, %v64, %v65
  %69 = vst [vmem:[%s1] sm:$0xff] %v63
  %v70 = vlaneseq
  %vm71 = vcmp.ge.s32.totalorder %v70, 0
  %vm72 = vcmp.lt.s32.totalorder %v70, 512
  %vm73 = vmand %vm71, %vm72
  %74 = vst.msk [vmem:[%s1 + $0x8] sm:$0xf] %vm73, %v66
  // Predicated region
  $region6: #{_forward_impl.1} parent=0 // pred_check
    _
  $region7: #{_forward_impl.1} parent=0 // pred_check_branch
    %76 = sbr.rel (0) target = $region9
  $region8: #{_forward_impl.1} parent=0 // pred_region
    _
  $region9: #{_forward_impl.1} parent=0 // pred_fallthru
    _
  // Predicated region
  $region10: #{_forward_impl.1} parent=0 // pred_check
    _
  $region11: #{_forward_impl.1} parent=0 // pred_check_branch
    %78 = sbr.rel (0) target = $region13
  $region12: #{_forward_impl.1} parent=0 // pred_region
    _
  $region13: #{_forward_impl.1} parent=0 // pred_fallthru
    _

</llo_original>
